<compile_context>
chip_gen: v6e
topology: v6e:2x2x1
jax: 0.10.0
libtpu: 0.0.40
codegen_flags: <defaults>
</compile_context>

<pallas_src>
import jax
import jax.numpy as jnp
from jax.experimental import pallas as pl
from jax.experimental.pallas import tpu as pltpu


def _round_up(x, m):
    return ((x + m - 1) // m) * m


def _time_encoder_kernel(tt_ref, sw_ref, b_ref, km_ref, lin_ref, out_ref):
    # tt_ref : (TN, K)    times (only K lanes are meaningful)
    # sw_ref : (K, K*E)   expanded weights: sw[k, k*E + e] = w_fused[e]
    # b_ref  : (1, K*E)   biases tiled per type:  b[k*E + e] = b_fused[e]
    # km_ref : (1, K*E)   k_map flattened (k, e) -> k*E + e
    # lin_ref: (1, K*E)   1.0 on the "linear" lane (e == 0), 0.0 elsewhere
    # out_ref: (TN, K*E)  lane-dense output block
    t = tt_ref[...]                        # (TN, K)
    K = t.shape[1]

    # z[r, k*E + e] = t[r, k] * w[e] + b[e]
    # Built as K rank-1 broadcast FMAs; the K-wide loop unrolls statically.
    z = b_ref[...]                         # (1, K*E), broadcasts on first add
    for k in range(K):
        z = z + t[:, k : k + 1] * sw_ref[k : k + 1, :]   # (TN, K*E)

    lin = lin_ref[...]                     # (1, K*E)
    mixed = lin * z + (1.0 - lin) * jnp.sin(z)           # identity vs sin
    out_ref[...] = (mixed * km_ref[...]).astype(out_ref.dtype)


def time_encoder_forward(tt, non_pad_mask, params, *, row_tile=1024,
                         out_dtype=jnp.float32):
    """Pallas implementation of Time_Encoder.forward.

    tt:            (B, L, K) or (B, L) float32 times
    non_pad_mask:  (B, L, K) — unused by the forward math (kept for API parity)
    params: dict with
        'periodic_w' (E-1, 1), 'periodic_b' (E-1,),
        'linear_w'   (1, 1),   'linear_b'   (1,),
        'k_map'      (1, 1, K, E)
    returns (B, L, K, E) in out_dtype (float32 by default; pass jnp.bfloat16 to
    halve HBM writeback if downstream tolerates it).
    """
    del non_pad_mask  # not used in the original forward's returned value

    k_map = params["k_map"]                # (1, 1, K, E)
    K = k_map.shape[2]
    E = k_map.shape[3]
    KE = K * E

    if tt.ndim == 2:
        # 'b l -> b l 1 1' case: broadcasting against k_map expands to K types.
        tt = jnp.broadcast_to(tt[:, :, None], tt.shape + (K,))
    B, L, Kt = tt.shape
    assert Kt == K, "num_types of tt must match k_map"

    f32 = jnp.float32
    # Fuse the two 1->x linears into single weight / bias vectors of length E.
    w_full = jnp.concatenate(
        [params["linear_w"].reshape(1), params["periodic_w"].reshape(-1)]
    ).astype(f32)                                        # (E,)
    b_full = jnp.concatenate(
        [params["linear_b"].reshape(1), params["periodic_b"].reshape(-1)]
    ).astype(f32)                                        # (E,)

    # Pre-tiled lane-dense constants (resident in VMEM, never re-DMA'd).
    eye_k = jnp.eye(K, dtype=f32)                                       # (K, K)
    sw = (eye_k[:, :, None] * w_full[None, None, :]).reshape(K, KE)     # (K, K*E)
    b_tiled = jnp.tile(b_full, K).reshape(1, KE)                        # (1, K*E)
    km_flat = k_map.reshape(1, KE).astype(f32)                          # (1, K*E)
    lin_mask = jnp.tile(
        jnp.concatenate([jnp.ones((1,), f32), jnp.zeros((E - 1,), f32)]), K
    ).reshape(1, KE)                                                    # (1, K*E)

    N = B * L
    tt_flat = tt.reshape(N, K).astype(f32)

    # Pick a sublane-aligned row block; pad N so the grid divides evenly
    # (padded rows are sliced off after the call).
    block_rows = min(_round_up(row_tile, 8), _round_up(N, 8))
    n_pad = _round_up(N, block_rows)
    if n_pad != N:
        tt_flat = jnp.pad(tt_flat, ((0, n_pad - N), (0, 0)))
    grid = (n_pad // block_rows,)

    out_flat = pl.pallas_call(
        _time_encoder_kernel,
        out_shape=jax.ShapeDtypeStruct((n_pad, KE), out_dtype),
        grid_spec=pltpu.PrefetchScalarGridSpec(
            num_scalar_prefetch=0,
            grid=grid,
            in_specs=[
                pl.BlockSpec((block_rows, K), lambda i: (i, 0)),   # tt rows
                pl.BlockSpec((K, KE), lambda i: (0, 0)),           # expanded W
                pl.BlockSpec((1, KE), lambda i: (0, 0)),           # biases
                pl.BlockSpec((1, KE), lambda i: (0, 0)),           # k_map
                pl.BlockSpec((1, KE), lambda i: (0, 0)),           # linear mask
            ],
            out_specs=pl.BlockSpec((block_rows, KE), lambda i: (i, 0)),
        ),
        compiler_params=pltpu.CompilerParams(
            dimension_semantics=("parallel",)
        ),
    )(tt_flat, sw, b_tiled, km_flat, lin_mask)

    return out_flat[:N].reshape(B, L, K, E)


def time_encoder_reference(tt, params):
    """Plain-JAX reference mirroring the PyTorch forward."""
    k_map = params["k_map"]
    if tt.ndim == 2:
        t = tt[:, :, None, None]                          # (B, L, 1, 1)
    else:
        t = tt[:, :, :, None]                             # (B, L, K, 1)
    out2 = jnp.sin(t * params["periodic_w"].reshape(-1) + params["periodic_b"])
    out1 = t * params["linear_w"].reshape(()) + params["linear_b"].reshape(())
    out = jnp.concatenate([out1, out2], axis=-1)          # (B, L, K or 1, E)
    return out * k_map


def init_params(key, embed_time, num_types):
    k1, k2, k3, k4 = jax.random.split(key, 4)
    # Deterministic synthetic init (shapes match the PyTorch module).
    return {
        "periodic_w": jax.random.normal(k1, (embed_time - 1, 1), jnp.float32) * 0.5,
        "periodic_b": jax.random.normal(k2, (embed_time - 1,), jnp.float32) * 0.1,
        "linear_w": jax.random.normal(k3, (1, 1), jnp.float32) * 0.5,
        "linear_b": jax.random.normal(k4, (1,), jnp.float32) * 0.1,
        "k_map": jnp.ones((1, 1, num_types, embed_time), jnp.float32),
    }


if __name__ == "__main__":
    B, L, K, E = 2, 16, 4, 32  # batch, seq len, num_types, embed_time

    key = jax.random.PRNGKey(0)
    kp, kt, km = jax.random.split(key, 3)

    params = init_params(kp, E, K)
    tt = jax.random.uniform(kt, (B, L, K), jnp.float32, 0.0, 10.0)
    non_pad_mask = (jax.random.uniform(km, (B, L, K)) > 0.2).astype(jnp.float32)

    out = time_encoder_forward(tt, non_pad_mask, params)
    out = jax.block_until_ready(out)

    ref = time_encoder_reference(tt, params)
    assert out.shape == (B, L, K, E)
    assert jnp.allclose(out, ref, atol=1e-5, rtol=1e-5), "mismatch vs reference"

    # Also exercise the 'b l' (2-D tt) broadcast path at an odd row count.
    tt2 = jax.random.uniform(kt, (3, 5), jnp.float32, 0.0, 10.0)
    out2 = time_encoder_forward(tt2, None, params)
    out2 = jax.block_until_ready(out2)
    ref2 = time_encoder_reference(tt2, params)
    assert out2.shape == (3, 5, K, E)
    assert jnp.allclose(out2, ref2, atol=1e-5, rtol=1e-5), "mismatch (2-D tt)"

    print("KERNEL_OK")
</pallas_src>

<mosaic_0001>
module attributes {stable_mosaic.version = 11 : i64} {
  func.func @_time_encoder_kernel(%arg0: i32, %arg1: memref<32x4xf32, #tpu.memory_space<vmem>>, %arg2: memref<4x128xf32, #tpu.memory_space<vmem>>, %arg3: memref<1x128xf32, #tpu.memory_space<vmem>>, %arg4: memref<1x128xf32, #tpu.memory_space<vmem>>, %arg5: memref<1x128xf32, #tpu.memory_space<vmem>>, %arg6: memref<32x128xf32, #tpu.memory_space<vmem>>) attributes {dimension_semantics = [#tpu.dimension_semantics<parallel>], iteration_bounds = array<i64: 1>, scalar_prefetch = 0 : i64, scratch_operands = 0 : i64, tpu.core_type = #tpu.core_type<tc>, window_params = [{transform_indices = @transform_0, window_bounds = array<i64: 32, 4>}, {pipeline_mode = #tpu.pipeline_mode<synchronous>, transform_indices = @transform_1, window_bounds = array<i64: 4, 128>}, {pipeline_mode = #tpu.pipeline_mode<synchronous>, transform_indices = @transform_2, window_bounds = array<i64: 1, 128>}, {pipeline_mode = #tpu.pipeline_mode<synchronous>, transform_indices = @transform_3, window_bounds = array<i64: 1, 128>}, {pipeline_mode = #tpu.pipeline_mode<synchronous>, transform_indices = @transform_4, window_bounds = array<i64: 1, 128>}, {transform_indices = @transform_5, window_bounds = array<i64: 32, 128>}]} {
    %c0 = arith.constant 0 : index
    %c0_0 = arith.constant 0 : index
    %0 = vector.load %arg1[%c0, %c0_0] : memref<32x4xf32, #tpu.memory_space<vmem>>, vector<32x4xf32>
    %c0_1 = arith.constant 0 : index
    %c0_2 = arith.constant 0 : index
    %1 = vector.load %arg3[%c0_1, %c0_2] : memref<1x128xf32, #tpu.memory_space<vmem>>, vector<1x128xf32>
    %2 = vector.extract_strided_slice %0 {offsets = [0, 0], sizes = [32, 1], strides = [1, 1]} : vector<32x4xf32> to vector<32x1xf32>
    %c0_3 = arith.constant 0 : index
    %c0_4 = arith.constant 0 : index
    %3 = vector.load %arg2[%c0_3, %c0_4] : memref<4x128xf32, #tpu.memory_space<vmem>>, vector<1x128xf32>
    %4 = vector.broadcast %2 : vector<32x1xf32> to vector<32x128xf32>
    %5 = vector.broadcast %3 : vector<1x128xf32> to vector<32x128xf32>
    %6 = arith.mulf %4, %5 : vector<32x128xf32>
    %7 = vector.broadcast %1 : vector<1x128xf32> to vector<32x128xf32>
    %8 = arith.addf %7, %6 : vector<32x128xf32>
    %9 = vector.extract_strided_slice %0 {offsets = [0, 1], sizes = [32, 1], strides = [1, 1]} : vector<32x4xf32> to vector<32x1xf32>
    %c1 = arith.constant 1 : index
    %c0_5 = arith.constant 0 : index
    %10 = vector.load %arg2[%c1, %c0_5] : memref<4x128xf32, #tpu.memory_space<vmem>>, vector<1x128xf32>
    %11 = vector.broadcast %9 : vector<32x1xf32> to vector<32x128xf32>
    %12 = vector.broadcast %10 : vector<1x128xf32> to vector<32x128xf32>
    %13 = arith.mulf %11, %12 : vector<32x128xf32>
    %14 = arith.addf %8, %13 : vector<32x128xf32>
    %15 = vector.extract_strided_slice %0 {offsets = [0, 2], sizes = [32, 1], strides = [1, 1]} : vector<32x4xf32> to vector<32x1xf32>
    %c2 = arith.constant 2 : index
    %c0_6 = arith.constant 0 : index
    %16 = vector.load %arg2[%c2, %c0_6] : memref<4x128xf32, #tpu.memory_space<vmem>>, vector<1x128xf32>
    %17 = vector.broadcast %15 : vector<32x1xf32> to vector<32x128xf32>
    %18 = vector.broadcast %16 : vector<1x128xf32> to vector<32x128xf32>
    %19 = arith.mulf %17, %18 : vector<32x128xf32>
    %20 = arith.addf %14, %19 : vector<32x128xf32>
    %21 = vector.extract_strided_slice %0 {offsets = [0, 3], sizes = [32, 1], strides = [1, 1]} : vector<32x4xf32> to vector<32x1xf32>
    %c3 = arith.constant 3 : index
    %c0_7 = arith.constant 0 : index
    %22 = vector.load %arg2[%c3, %c0_7] : memref<4x128xf32, #tpu.memory_space<vmem>>, vector<1x128xf32>
    %23 = vector.broadcast %21 : vector<32x1xf32> to vector<32x128xf32>
    %24 = vector.broadcast %22 : vector<1x128xf32> to vector<32x128xf32>
    %25 = arith.mulf %23, %24 : vector<32x128xf32>
    %26 = arith.addf %20, %25 : vector<32x128xf32>
    %c0_8 = arith.constant 0 : index
    %c0_9 = arith.constant 0 : index
    %27 = vector.load %arg5[%c0_8, %c0_9] : memref<1x128xf32, #tpu.memory_space<vmem>>, vector<1x128xf32>
    %28 = vector.broadcast %27 : vector<1x128xf32> to vector<32x128xf32>
    %29 = arith.mulf %28, %26 : vector<32x128xf32>
    %cst = arith.constant 1.000000e+00 : f32
    %30 = vector.broadcast %cst : f32 to vector<1x128xf32>
    %31 = arith.subf %30, %27 : vector<1x128xf32>
    %32 = math.sin %26 : vector<32x128xf32>
    %33 = vector.broadcast %31 : vector<1x128xf32> to vector<32x128xf32>
    %34 = arith.mulf %33, %32 : vector<32x128xf32>
    %35 = arith.addf %29, %34 : vector<32x128xf32>
    %c0_10 = arith.constant 0 : index
    %c0_11 = arith.constant 0 : index
    %36 = vector.load %arg4[%c0_10, %c0_11] : memref<1x128xf32, #tpu.memory_space<vmem>>, vector<1x128xf32>
    %37 = vector.broadcast %36 : vector<1x128xf32> to vector<32x128xf32>
    %38 = arith.mulf %35, %37 : vector<32x128xf32>
    %c0_12 = arith.constant 0 : index
    %c0_13 = arith.constant 0 : index
    %39 = vector.load %arg6[%c0_12, %c0_13] : memref<32x128xf32, #tpu.memory_space<vmem>>, vector<32x128xf32>
    tpu.vector_store %arg6[%c0_12, %c0_13], %38 {strides = array<i32>} : memref<32x128xf32, #tpu.memory_space<vmem>>, vector<32x128xf32>,
    return
  }
  func.func @transform_0(%arg0: i32) -> (i32, i32) {
    %c0_i32 = arith.constant 0 : i32
    %c0_i32_0 = arith.constant 0 : i32
    return %arg0, %c0_i32 : i32, i32
  }
  func.func @transform_1(%arg0: i32) -> (i32, i32) {
    %c0_i32 = arith.constant 0 : i32
    %c0_i32_0 = arith.constant 0 : i32
    %c0_i32_1 = arith.constant 0 : i32
    return %c0_i32, %c0_i32_0 : i32, i32
  }
  func.func @transform_2(%arg0: i32) -> (i32, i32) {
    %c0_i32 = arith.constant 0 : i32
    %c0_i32_0 = arith.constant 0 : i32
    %c0_i32_1 = arith.constant 0 : i32
    return %c0_i32, %c0_i32_0 : i32, i32
  }
  func.func @transform_3(%arg0: i32) -> (i32, i32) {
    %c0_i32 = arith.constant 0 : i32
    %c0_i32_0 = arith.constant 0 : i32
    %c0_i32_1 = arith.constant 0 : i32
    return %c0_i32, %c0_i32_0 : i32, i32
  }
  func.func @transform_4(%arg0: i32) -> (i32, i32) {
    %c0_i32 = arith.constant 0 : i32
    %c0_i32_0 = arith.constant 0 : i32
    %c0_i32_1 = arith.constant 0 : i32
    return %c0_i32, %c0_i32_0 : i32, i32
  }
  func.func @transform_5(%arg0: i32) -> (i32, i32) {
    %c0_i32 = arith.constant 0 : i32
    %c0_i32_0 = arith.constant 0 : i32
    return %arg0, %c0_i32 : i32, i32
  }
}

</mosaic_0001>

<llo_original>
// kernel: tpu_custom_call.1
$region0: #{tpu_custom_call.1}
  #allocation0 [shape = 'u32[]', space=smem, size = 0x4, offset = 0x4, fixed_abs, tag = 'smem constant byte address 0x4 - core index']
  #allocation1 [shape = 'u32[144,128]{1,0:T(1,128)}', space=vmem, size = 0x12000, scoped, tag = 'internal scratch']
  %s0 = inlined_call_operand.vmem [shape: f32[32,4], index: 0, kind: input, shape index: {}]
  %s1 = inlined_call_operand.vmem [shape: f32[4,128], index: 1, kind: input, shape index: {}]
  %s2 = inlined_call_operand.vmem [shape: f32[1,128], index: 2, kind: input, shape index: {}]
  %s3 = inlined_call_operand.vmem [shape: f32[1,128], index: 3, kind: input, shape index: {}]
  %s4 = inlined_call_operand.vmem [shape: f32[1,128], index: 4, kind: input, shape index: {}]
  %s5 = inlined_call_operand.hbm [shape: f32[32,128], index: 5, kind: output, shape index: {}]
  %s6 = sld [smem:[#allocation0]]
  $region30: #{tpu_custom_call.1} parent=0
    _
  %s8 = ssub.s32 1, %s6
  %s9 = scalar_select 0, %s8, %s6
  $region1: #{tpu_custom_call.1} parent=0
    #allocation2 [shape = 'u8[16384]{0}', space=vmem, size = 0x4000, scoped, tag = 'output window, operand 0, single buffered']
    #allocation3 [shape = 's32[1]{0}', space=sflag, size = 0x4, scoped, tag = 'scoped memory for tpu_custom_call.1']
    %10 = vsyncpa [#allocation3], 0
    // Predicated region
    $region2: #{tpu_custom_call.1} parent=1 // pred_check
      _
    $region3: #{tpu_custom_call.1} parent=1 // pred_check_branch
      %12 = sbr.rel (0) target = $region5
    $region4: #{tpu_custom_call.1} parent=1 // pred_region
      _
    $region5: #{tpu_custom_call.1} parent=1 // pred_fallthru
      _
    // Predicated region
    $region6: #{tpu_custom_call.1} parent=1 // pred_check
      _
    $region7: #{tpu_custom_call.1} parent=1 // pred_check_branch
      %14 = sbr.rel (0) target = $region9
    $region8: #{tpu_custom_call.1} parent=1 // pred_region
      _
    $region9: #{tpu_custom_call.1} parent=1 // pred_fallthru
      _
    // Predicated region
    $region10: #{tpu_custom_call.1} parent=1 // pred_check
      _
    $region11: #{tpu_custom_call.1} parent=1 // pred_check_branch
      %16 = sbr.rel (0) target = $region13
    $region12: #{tpu_custom_call.1} parent=1 // pred_region
      _
    $region13: #{tpu_custom_call.1} parent=1 // pred_fallthru
      _
    // Predicated region
    $region14: #{tpu_custom_call.1} parent=1 // pred_check
      _
    $region15: #{tpu_custom_call.1} parent=1 // pred_check_branch
      %18 = sbr.rel (0) target = $region17
    $region16: #{tpu_custom_call.1} parent=1 // pred_region
      _
    $region17: #{tpu_custom_call.1} parent=1 // pred_fallthru
      _
    // Predicated region
    $region18: #{tpu_custom_call.1} parent=1 // pred_check
      _
    $region19: #{tpu_custom_call.1} parent=1 // pred_check_branch
      %20 = sbr.rel (0) target = $region21
    $region20: #{tpu_custom_call.1} parent=1 // pred_region
      _
    $region21: #{tpu_custom_call.1} parent=1 // pred_fallthru
      _
    %v21 = vld [vmem:[%s0] sm:$0xff]
    %v22 = vld [vmem:[%s0 + $0x8] sm:$0xff]
    %v23 = vld [vmem:[%s0 + $0x10] sm:$0xff]
    %v24 = vld [vmem:[%s0 + $0x18] sm:$0xff]
    %v25 = vld [vmem:[%s2] sm:$0x1]
    %v26 = vld [vmem:[%s1] sm:$0x1]
    %28 = vset.pattern.permute.xlu0 0
    %29 = vperm.xlu0 %28, %v21
    %v30 = vpop.permute.xlu0 %29
    %33 = vset.pattern.permute.xlu0 0
    %34 = vperm.xlu0 %33, %v22
    %v35 = vpop.permute.xlu0 %34
    %38 = vset.pattern.permute.xlu0 0
    %39 = vperm.xlu0 %38, %v23
    %v40 = vpop.permute.xlu0 %39
    %43 = vset.pattern.permute.xlu0 0
    %44 = vperm.xlu0 %43, %v24
    %v45 = vpop.permute.xlu0 %44
    %v47 = vlaneseq
    %v48 = vshrl.u32 %v47, 7
    %v49 = vsub.s32 0, %v48
    %v50 = vrot.slane %v26, %v49
    %v51 = vmul.f32 %v30, %v50
    %v52 = vmul.f32 %v35, %v50
    %v53 = vmul.f32 %v40, %v50
    %v54 = vmul.f32 %v45, %v50
    %v56 = vlaneseq
    %v57 = vshrl.u32 %v56, 7
    %v58 = vsub.s32 0, %v57
    %v59 = vrot.slane %v25, %v58
    %v61 = vadd.f32 %v59, %v51
    %v62 = vadd.f32 %v59, %v52
    %v63 = vadd.f32 %v59, %v53
    %v64 = vadd.f32 %v59, %v54
    %v65 = vld [vmem:[%s1 + $0x1] sm:$0x1]
    %66 = vset.pattern.permute.xlu0 1
    %67 = vperm.xlu0 %66, %v21
    %v68 = vpop.permute.xlu0 %67
    %70 = vset.pattern.permute.xlu0 1
    %71 = vperm.xlu0 %70, %v22
    %v72 = vpop.permute.xlu0 %71
    %74 = vset.pattern.permute.xlu0 1
    %75 = vperm.xlu0 %74, %v23
    %v76 = vpop.permute.xlu0 %75
    %78 = vset.pattern.permute.xlu0 1
    %79 = vperm.xlu0 %78, %v24
    %v80 = vpop.permute.xlu0 %79
    %v82 = vlaneseq
    %v83 = vshrl.u32 %v82, 7
    %v84 = vsub.s32 0, %v83
    %v85 = vrot.slane %v65, %v84
    %v86 = vmul.f32 %v68, %v85
    %v87 = vmul.f32 %v72, %v85
    %v88 = vmul.f32 %v76, %v85
    %v89 = vmul.f32 %v80, %v85
    %v90 = vadd.f32 %v61, %v86
    %v91 = vadd.f32 %v62, %v87
    %v92 = vadd.f32 %v63, %v88
    %v93 = vadd.f32 %v64, %v89
    %v94 = vld [vmem:[%s1 + $0x2] sm:$0x1]
    %95 = vset.pattern.permute.xlu0 2
    %96 = vperm.xlu0 %95, %v21
    %v97 = vpop.permute.xlu0 %96
    %99 = vset.pattern.permute.xlu0 2
    %100 = vperm.xlu0 %99, %v22
    %v101 = vpop.permute.xlu0 %100
    %103 = vset.pattern.permute.xlu0 2
    %104 = vperm.xlu0 %103, %v23
    %v105 = vpop.permute.xlu0 %104
    %107 = vset.pattern.permute.xlu0 2
    %108 = vperm.xlu0 %107, %v24
    %v109 = vpop.permute.xlu0 %108
    %v111 = vlaneseq
    %v112 = vshrl.u32 %v111, 7
    %v113 = vsub.s32 0, %v112
    %v114 = vrot.slane %v94, %v113
    %v115 = vmul.f32 %v97, %v114
    %v116 = vmul.f32 %v101, %v114
    %v117 = vmul.f32 %v105, %v114
    %v118 = vmul.f32 %v109, %v114
    %v119 = vadd.f32 %v90, %v115
    %v120 = vadd.f32 %v91, %v116
    %v121 = vadd.f32 %v92, %v117
    %v122 = vadd.f32 %v93, %v118
    %v123 = vld [vmem:[%s1 + $0x3] sm:$0x1]
    %124 = vset.pattern.permute.xlu0 3
    %125 = vperm.xlu0 %124, %v21
    %v126 = vpop.permute.xlu0 %125
    %128 = vset.pattern.permute.xlu0 3
    %129 = vperm.xlu0 %128, %v22
    %v130 = vpop.permute.xlu0 %129
    %132 = vset.pattern.permute.xlu0 3
    %133 = vperm.xlu0 %132, %v23
    %v134 = vpop.permute.xlu0 %133
    %136 = vset.pattern.permute.xlu0 3
    %137 = vperm.xlu0 %136, %v24
    %v138 = vpop.permute.xlu0 %137
    %v140 = vlaneseq
    %v141 = vshrl.u32 %v140, 7
    %v142 = vsub.s32 0, %v141
    %v143 = vrot.slane %v123, %v142
    %v144 = vmul.f32 %v126, %v143
    %v145 = vmul.f32 %v130, %v143
    %v146 = vmul.f32 %v134, %v143
    %v147 = vmul.f32 %v138, %v143
    %v148 = vadd.f32 %v119, %v144
    %v149 = vadd.f32 %v120, %v145
    %v150 = vadd.f32 %v121, %v146
    %v151 = vadd.f32 %v122, %v147
    %v152 = vld [vmem:[%s4] sm:$0x1]
    %v154 = vlaneseq
    %v155 = vshrl.u32 %v154, 7
    %v156 = vsub.s32 0, %v155
    %v157 = vrot.slane %v152, %v156
    %v159 = vmul.f32 %v157, %v148
    %v160 = vmul.f32 %v157, %v149
    %v161 = vmul.f32 %v157, %v150
    %v162 = vmul.f32 %v157, %v151
    %v163 = vsub.f32 1.0, %v152
    %v164 = vand.u32 2147483647, %v148
    %vm165 = vcmp.le.f32.partialorder %v164, 0.7853982
    %vm166 = vcmp.lt.s32.totalorder %v148, 0
    %v167 = vand.u32 %v148, 2139095040
    %v168 = vshrl.u32 %v167, 23
    %v169 = vsub.s32 %v168, 127
    %v170 = vand.u32 2147483647, %v148
    %v171 = vand.u32 %v170, 8388607
    %v172 = vor.u32 %v171, 8388608
    %v173 = vsub.s32 0, %v172
    %v174 = vadd.s32 %v169, 1
    %vm175 = vcmp.gt.s32.totalorder %v174, 0
    %v176 = vsel %vm175, %v174, 0
    %v177 = vshrl.u32 %v176, 5
    %v178 = vand.u32 %v176, 31
    %v179 = vsub.s32 32, %v178
    %v180 = vshrl.u32 683565275, %v179
    %v181 = vshll.u32 683565275, %v178
    %v182 = vshrl.u32 2475754826, %v179
    %v183 = vor.u32 %v181, %v182
    %v184 = vshll.u32 2475754826, %v178
    %v185 = vshrl.u32 2131351028, %v179
    %v186 = vor.u32 %v184, %v185
    %v187 = vshll.u32 2131351028, %v178
    %v188 = vshrl.u32 2102212464, %v179
    %v189 = vor.u32 %v187, %v188
    %v190 = vshll.u32 2102212464, %v178
    %v191 = vshrl.u32 920167782, %v179
    %v192 = vor.u32 %v190, %v191
    %v193 = vshll.u32 920167782, %v178
    %v194 = vshrl.u32 1326507024, %v179
    %v195 = vor.u32 %v193, %v194
    %vm196 = vcmp.lt.s32.totalorder %v177, 1
    %vm197 = vcmp.lt.s32.totalorder %v177, 2
    %vm198 = vcmp.lt.s32.totalorder %v177, 3
    %vm199 = vcmp.lt.s32.totalorder %v177, 4
    %v200 = vsel %vm196, %v180, %v183
    %v201 = vsel %vm199, %v189, 2102212464
    %v202 = vsel %vm198, %v186, %v201
    %v203 = vsel %vm197, %v200, %v202
    %v204 = vsel %vm196, %v183, %v186
    %v205 = vsel %vm199, %v192, 920167782
    %v206 = vsel %vm198, %v189, %v205
    %v207 = vsel %vm197, %v204, %v206
    %v208 = vsel %vm196, %v186, %v189
    %v209 = vsel %vm199, %v195, 1326507024
    %v210 = vsel %vm198, %v192, %v209
    %v211 = vsel %vm197, %v208, %v210
    %v212 = vshll.u32 %v172, 8
    %v213 = vmul.u32.u64.compose %v212, %v211
    %v214 = vextract.low.u32 %v213
    %v215 = vextract.high.u32 %v213
    %v216 = vmul.u32.u64.compose %v212, %v207
    %v217 = vextract.low.u32 %v216
    %v218 = vextract.high.u32 %v216
    %v219 = vmul.u32 %v212, %v203
    %v220 = vadd.s32 %v215, %v217
    %vm221 = vc.u32 %v215, %v217
    %v222 = vadd.s32 %v218, 1
    %v223 = vsel %vm221, %v222, %v218
    %v224 = vadd.s32 %v219, %v223
    %v225 = vadd.s32 %v224, 536870912
    %v226 = vshrl.u32 %v225, 30
    %v227 = vshll.u32 %v226, 30
    %v228 = vsub.s32 %v224, %v227
    %vm229 = vcmp.lt.s32.totalorder %v228, 0
    %v230 = vsub.s32 0, %v228
    %v231 = vsel %vm229, %v230, %v228
    %v232 = vclz %v231
    %v233 = vsub.s32 %v232, 2
    %vm234 = vcmp.gt.s32.totalorder 0, %v233
    %v235 = vsel %vm234, 0, %v233
    %v236 = vsub.s32 32, %v235
    %v237 = vshll.u32 %v228, %v235
    %v238 = vshrl.u32 %v220, %v236
    %v239 = vor.u32 %v237, %v238
    %v240 = vsub.s32 4294967266, %v235
    %v241 = vadd.s32 %v240, 127
    %v242 = vshll.u32 %v241, 23
    %v243 = vor.u32 4788187, %v242
    %v244 = vand.u32 2147483647, %v243
    %v246 = vcvt.s32.f32 %v239
    %v247 = vmul.f32 %v246, %v244
    %v248 = vxor.u32 %v247, 2147483648
    %v249 = vsel %vm166, %v248, %v247
    %v250 = vsub.s32 4, %v226
    %v251 = vsel %vm166, %v250, %v226
    %v252 = vsel %vm165, %v148, %v249
    %v253 = vsel %vm165, 0, %v251
    %v254 = vcosq.f32.pop %v252
    %v255 = vsinq.f32.pop %v252
    %vm256 = vweird.f32 %v148
    %v257 = vadd.s32 %v253, 3
    %v258 = vand.u32 %v257, 3
    %vm259 = vcmp.lt.s32.totalorder %v258, 2
    %vm260 = vcmp.eq.s32.totalorder %v258, 0
    %v261 = vxor.u32 %v255, 2147483648
    %v262 = vsel %vm260, %v254, %v261
    %vm263 = vcmp.eq.s32.totalorder %v258, 2
    %v264 = vxor.u32 %v254, 2147483648
    %v265 = vsel %vm263, %v264, %v255
    %v266 = vsel %vm259, %v262, %v265
    %v267 = vsel %vm256, nan, %v266
    %v268 = vand.u32 2147483647, %v149
    %vm269 = vcmp.le.f32.partialorder %v268, 0.7853982
    %vm270 = vcmp.lt.s32.totalorder %v149, 0
    %v271 = vand.u32 %v149, 2139095040
    %v272 = vshrl.u32 %v271, 23
    %v273 = vsub.s32 %v272, 127
    %v274 = vand.u32 2147483647, %v149
    %v275 = vand.u32 %v274, 8388607
    %v276 = vor.u32 %v275, 8388608
    %v277 = vsub.s32 0, %v276
    %v278 = vadd.s32 %v273, 1
    %vm279 = vcmp.gt.s32.totalorder %v278, 0
    %v280 = vsel %vm279, %v278, 0
    %v281 = vshrl.u32 %v280, 5
    %v282 = vand.u32 %v280, 31
    %v283 = vsub.s32 32, %v282
    %v284 = vshrl.u32 683565275, %v283
    %v285 = vshll.u32 683565275, %v282
    %v286 = vshrl.u32 2475754826, %v283
    %v287 = vor.u32 %v285, %v286
    %v288 = vshll.u32 2475754826, %v282
    %v289 = vshrl.u32 2131351028, %v283
    %v290 = vor.u32 %v288, %v289
    %v291 = vshll.u32 2131351028, %v282
    %v292 = vshrl.u32 2102212464, %v283
    %v293 = vor.u32 %v291, %v292
    %v294 = vshll.u32 2102212464, %v282
    %v295 = vshrl.u32 920167782, %v283
    %v296 = vor.u32 %v294, %v295
    %v297 = vshll.u32 920167782, %v282
    %v298 = vshrl.u32 1326507024, %v283
    %v299 = vor.u32 %v297, %v298
    %vm300 = vcmp.lt.s32.totalorder %v281, 1
    %vm301 = vcmp.lt.s32.totalorder %v281, 2
    %vm302 = vcmp.lt.s32.totalorder %v281, 3
    %vm303 = vcmp.lt.s32.totalorder %v281, 4
    %v304 = vsel %vm300, %v284, %v287
    %v305 = vsel %vm303, %v293, 2102212464
    %v306 = vsel %vm302, %v290, %v305
    %v307 = vsel %vm301, %v304, %v306
    %v308 = vsel %vm300, %v287, %v290
    %v309 = vsel %vm303, %v296, 920167782
    %v310 = vsel %vm302, %v293, %v309
    %v311 = vsel %vm301, %v308, %v310
    %v312 = vsel %vm300, %v290, %v293
    %v313 = vsel %vm303, %v299, 1326507024
    %v314 = vsel %vm302, %v296, %v313
    %v315 = vsel %vm301, %v312, %v314
    %v316 = vshll.u32 %v276, 8
    %v317 = vmul.u32.u64.compose %v316, %v315
    %v318 = vextract.low.u32 %v317
    %v319 = vextract.high.u32 %v317
    %v320 = vmul.u32.u64.compose %v316, %v311
    %v321 = vextract.low.u32 %v320
    %v322 = vextract.high.u32 %v320
    %v323 = vmul.u32 %v316, %v307
    %v324 = vadd.s32 %v319, %v321
    %vm325 = vc.u32 %v319, %v321
    %v326 = vadd.s32 %v322, 1
    %v327 = vsel %vm325, %v326, %v322
    %v328 = vadd.s32 %v323, %v327
    %v329 = vadd.s32 %v328, 536870912
    %v330 = vshrl.u32 %v329, 30
    %v331 = vshll.u32 %v330, 30
    %v332 = vsub.s32 %v328, %v331
    %vm333 = vcmp.lt.s32.totalorder %v332, 0
    %v334 = vsub.s32 0, %v332
    %v335 = vsel %vm333, %v334, %v332
    %v336 = vclz %v335
    %v337 = vsub.s32 %v336, 2
    %vm338 = vcmp.gt.s32.totalorder 0, %v337
    %v339 = vsel %vm338, 0, %v337
    %v340 = vsub.s32 32, %v339
    %v341 = vshll.u32 %v332, %v339
    %v342 = vshrl.u32 %v324, %v340
    %v343 = vor.u32 %v341, %v342
    %v344 = vsub.s32 4294967266, %v339
    %v345 = vadd.s32 %v344, 127
    %v346 = vshll.u32 %v345, 23
    %v347 = vor.u32 4788187, %v346
    %v348 = vand.u32 2147483647, %v347
    %v350 = vcvt.s32.f32 %v343
    %v351 = vmul.f32 %v350, %v348
    %v352 = vxor.u32 %v351, 2147483648
    %v353 = vsel %vm270, %v352, %v351
    %v354 = vsub.s32 4, %v330
    %v355 = vsel %vm270, %v354, %v330
    %v356 = vsel %vm269, %v149, %v353
    %v357 = vsel %vm269, 0, %v355
    %v358 = vcosq.f32.pop %v356
    %v359 = vsinq.f32.pop %v356
    %vm360 = vweird.f32 %v149
    %v361 = vadd.s32 %v357, 3
    %v362 = vand.u32 %v361, 3
    %vm363 = vcmp.lt.s32.totalorder %v362, 2
    %vm364 = vcmp.eq.s32.totalorder %v362, 0
    %v365 = vxor.u32 %v359, 2147483648
    %v366 = vsel %vm364, %v358, %v365
    %vm367 = vcmp.eq.s32.totalorder %v362, 2
    %v368 = vxor.u32 %v358, 2147483648
    %v369 = vsel %vm367, %v368, %v359
    %v370 = vsel %vm363, %v366, %v369
    %v371 = vsel %vm360, nan, %v370
    %v372 = vand.u32 2147483647, %v150
    %vm373 = vcmp.le.f32.partialorder %v372, 0.7853982
    %vm374 = vcmp.lt.s32.totalorder %v150, 0
    %v375 = vand.u32 %v150, 2139095040
    %v376 = vshrl.u32 %v375, 23
    %v377 = vsub.s32 %v376, 127
    %v378 = vand.u32 2147483647, %v150
    %v379 = vand.u32 %v378, 8388607
    %v380 = vor.u32 %v379, 8388608
    %v381 = vsub.s32 0, %v380
    %v382 = vadd.s32 %v377, 1
    %vm383 = vcmp.gt.s32.totalorder %v382, 0
    %v384 = vsel %vm383, %v382, 0
    %v385 = vshrl.u32 %v384, 5
    %v386 = vand.u32 %v384, 31
    %v387 = vsub.s32 32, %v386
    %v388 = vshrl.u32 683565275, %v387
    %v389 = vshll.u32 683565275, %v386
    %v390 = vshrl.u32 2475754826, %v387
    %v391 = vor.u32 %v389, %v390
    %v392 = vshll.u32 2475754826, %v386
    %v393 = vshrl.u32 2131351028, %v387
    %v394 = vor.u32 %v392, %v393
    %v395 = vshll.u32 2131351028, %v386
    %v396 = vshrl.u32 2102212464, %v387
    %v397 = vor.u32 %v395, %v396
    %v398 = vshll.u32 2102212464, %v386
    %v399 = vshrl.u32 920167782, %v387
    %v400 = vor.u32 %v398, %v399
    %v401 = vshll.u32 920167782, %v386
    %v402 = vshrl.u32 1326507024, %v387
    %v403 = vor.u32 %v401, %v402
    %vm404 = vcmp.lt.s32.totalorder %v385, 1
    %vm405 = vcmp.lt.s32.totalorder %v385, 2
    %vm406 = vcmp.lt.s32.totalorder %v385, 3
    %vm407 = vcmp.lt.s32.totalorder %v385, 4
    %v408 = vsel %vm404, %v388, %v391
    %v409 = vsel %vm407, %v397, 2102212464
    %v410 = vsel %vm406, %v394, %v409
    %v411 = vsel %vm405, %v408, %v410
    %v412 = vsel %vm404, %v391, %v394
    %v413 = vsel %vm407, %v400, 920167782
    %v414 = vsel %vm406, %v397, %v413
    %v415 = vsel %vm405, %v412, %v414
    %v416 = vsel %vm404, %v394, %v397
    %v417 = vsel %vm407, %v403, 1326507024
    %v418 = vsel %vm406, %v400, %v417
    %v419 = vsel %vm405, %v416, %v418
    %v420 = vshll.u32 %v380, 8
    %v421 = vmul.u32.u64.compose %v420, %v419
    %v422 = vextract.low.u32 %v421
    %v423 = vextract.high.u32 %v421
    %v424 = vmul.u32.u64.compose %v420, %v415
    %v425 = vextract.low.u32 %v424
    %v426 = vextract.high.u32 %v424
    %v427 = vmul.u32 %v420, %v411
    %v428 = vadd.s32 %v423, %v425
    %vm429 = vc.u32 %v423, %v425
    %v430 = vadd.s32 %v426, 1
    %v431 = vsel %vm429, %v430, %v426
    %v432 = vadd.s32 %v427, %v431
    %v433 = vadd.s32 %v432, 536870912
    %v434 = vshrl.u32 %v433, 30
    %v435 = vshll.u32 %v434, 30
    %v436 = vsub.s32 %v432, %v435
    %vm437 = vcmp.lt.s32.totalorder %v436, 0
    %v438 = vsub.s32 0, %v436
    %v439 = vsel %vm437, %v438, %v436
    %v440 = vclz %v439
    %v441 = vsub.s32 %v440, 2
    %vm442 = vcmp.gt.s32.totalorder 0, %v441
    %v443 = vsel %vm442, 0, %v441
    %v444 = vsub.s32 32, %v443
    %v445 = vshll.u32 %v436, %v443
    %v446 = vshrl.u32 %v428, %v444
    %v447 = vor.u32 %v445, %v446
    %v448 = vsub.s32 4294967266, %v443
    %v449 = vadd.s32 %v448, 127
    %v450 = vshll.u32 %v449, 23
    %v451 = vor.u32 4788187, %v450
    %v452 = vand.u32 2147483647, %v451
    %v454 = vcvt.s32.f32 %v447
    %v455 = vmul.f32 %v454, %v452
    %v456 = vxor.u32 %v455, 2147483648
    %v457 = vsel %vm374, %v456, %v455
    %v458 = vsub.s32 4, %v434
    %v459 = vsel %vm374, %v458, %v434
    %v460 = vsel %vm373, %v150, %v457
    %v461 = vsel %vm373, 0, %v459
    %v462 = vcosq.f32.pop %v460
    %v463 = vsinq.f32.pop %v460
    %vm464 = vweird.f32 %v150
    %v465 = vadd.s32 %v461, 3
    %v466 = vand.u32 %v465, 3
    %vm467 = vcmp.lt.s32.totalorder %v466, 2
    %vm468 = vcmp.eq.s32.totalorder %v466, 0
    %v469 = vxor.u32 %v463, 2147483648
    %v470 = vsel %vm468, %v462, %v469
    %vm471 = vcmp.eq.s32.totalorder %v466, 2
    %v472 = vxor.u32 %v462, 2147483648
    %v473 = vsel %vm471, %v472, %v463
    %v474 = vsel %vm467, %v470, %v473
    %v475 = vsel %vm464, nan, %v474
    %v476 = vand.u32 2147483647, %v151
    %vm477 = vcmp.le.f32.partialorder %v476, 0.7853982
    %vm478 = vcmp.lt.s32.totalorder %v151, 0
    %v479 = vand.u32 %v151, 2139095040
    %v480 = vshrl.u32 %v479, 23
    %v481 = vsub.s32 %v480, 127
    %v482 = vand.u32 2147483647, %v151
    %v483 = vand.u32 %v482, 8388607
    %v484 = vor.u32 %v483, 8388608
    %v485 = vsub.s32 0, %v484
    %v486 = vadd.s32 %v481, 1
    %vm487 = vcmp.gt.s32.totalorder %v486, 0
    %v488 = vsel %vm487, %v486, 0
    %v489 = vshrl.u32 %v488, 5
    %v490 = vand.u32 %v488, 31
    %v491 = vsub.s32 32, %v490
    %v492 = vshrl.u32 683565275, %v491
    %v493 = vshll.u32 683565275, %v490
    %v494 = vshrl.u32 2475754826, %v491
    %v495 = vor.u32 %v493, %v494
    %v496 = vshll.u32 2475754826, %v490
    %v497 = vshrl.u32 2131351028, %v491
    %v498 = vor.u32 %v496, %v497
    %v499 = vshll.u32 2131351028, %v490
    %v500 = vshrl.u32 2102212464, %v491
    %v501 = vor.u32 %v499, %v500
    %v502 = vshll.u32 2102212464, %v490
    %v503 = vshrl.u32 920167782, %v491
    %v504 = vor.u32 %v502, %v503
    %v505 = vshll.u32 920167782, %v490
    %v506 = vshrl.u32 1326507024, %v491
    %v507 = vor.u32 %v505, %v506
    %vm508 = vcmp.lt.s32.totalorder %v489, 1
    %vm509 = vcmp.lt.s32.totalorder %v489, 2
    %vm510 = vcmp.lt.s32.totalorder %v489, 3
    %vm511 = vcmp.lt.s32.totalorder %v489, 4
    %v512 = vsel %vm508, %v492, %v495
    %v513 = vsel %vm511, %v501, 2102212464
    %v514 = vsel %vm510, %v498, %v513
    %v515 = vsel %vm509, %v512, %v514
    %v516 = vsel %vm508, %v495, %v498
    %v517 = vsel %vm511, %v504, 920167782
    %v518 = vsel %vm510, %v501, %v517
    %v519 = vsel %vm509, %v516, %v518
    %v520 = vsel %vm508, %v498, %v501
    %v521 = vsel %vm511, %v507, 1326507024
    %v522 = vsel %vm510, %v504, %v521
    %v523 = vsel %vm509, %v520, %v522
    %v524 = vshll.u32 %v484, 8
    %v525 = vmul.u32.u64.compose %v524, %v523
    %v526 = vextract.low.u32 %v525
    %v527 = vextract.high.u32 %v525
    %v528 = vmul.u32.u64.compose %v524, %v519
    %v529 = vextract.low.u32 %v528
    %v530 = vextract.high.u32 %v528
    %v531 = vmul.u32 %v524, %v515
    %v532 = vadd.s32 %v527, %v529
    %vm533 = vc.u32 %v527, %v529
    %v534 = vadd.s32 %v530, 1
    %v535 = vsel %vm533, %v534, %v530
    %v536 = vadd.s32 %v531, %v535
    %v537 = vadd.s32 %v536, 536870912
    %v538 = vshrl.u32 %v537, 30
    %v539 = vshll.u32 %v538, 30
    %v540 = vsub.s32 %v536, %v539
    %vm541 = vcmp.lt.s32.totalorder %v540, 0
    %v542 = vsub.s32 0, %v540
    %v543 = vsel %vm541, %v542, %v540
    %v544 = vclz %v543
    %v545 = vsub.s32 %v544, 2
    %vm546 = vcmp.gt.s32.totalorder 0, %v545
    %v547 = vsel %vm546, 0, %v545
    %v548 = vsub.s32 32, %v547
    %v549 = vshll.u32 %v540, %v547
    %v550 = vshrl.u32 %v532, %v548
    %v551 = vor.u32 %v549, %v550
    %v552 = vsub.s32 4294967266, %v547
    %v553 = vadd.s32 %v552, 127
    %v554 = vshll.u32 %v553, 23
    %v555 = vor.u32 4788187, %v554
    %v556 = vand.u32 2147483647, %v555
    %v558 = vcvt.s32.f32 %v551
    %v559 = vmul.f32 %v558, %v556
    %v560 = vxor.u32 %v559, 2147483648
    %v561 = vsel %vm478, %v560, %v559
    %v562 = vsub.s32 4, %v538
    %v563 = vsel %vm478, %v562, %v538
    %v564 = vsel %vm477, %v151, %v561
    %v565 = vsel %vm477, 0, %v563
    %v566 = vcosq.f32.pop %v564
    %v567 = vsinq.f32.pop %v564
    %vm568 = vweird.f32 %v151
    %v569 = vadd.s32 %v565, 3
    %v570 = vand.u32 %v569, 3
    %vm571 = vcmp.lt.s32.totalorder %v570, 2
    %vm572 = vcmp.eq.s32.totalorder %v570, 0
    %v573 = vxor.u32 %v567, 2147483648
    %v574 = vsel %vm572, %v566, %v573
    %vm575 = vcmp.eq.s32.totalorder %v570, 2
    %v576 = vxor.u32 %v566, 2147483648
    %v577 = vsel %vm575, %v576, %v567
    %v578 = vsel %vm571, %v574, %v577
    %v579 = vsel %vm568, nan, %v578
    %v581 = vlaneseq
    %v582 = vshrl.u32 %v581, 7
    %v583 = vsub.s32 0, %v582
    %v584 = vrot.slane %v163, %v583
    %v586 = vmul.f32 %v584, %v267
    %v587 = vmul.f32 %v584, %v371
    %v588 = vmul.f32 %v584, %v475
    %v589 = vmul.f32 %v584, %v579
    %v590 = vadd.f32 %v159, %v586
    %v591 = vadd.f32 %v160, %v587
    %v592 = vadd.f32 %v161, %v588
    %v593 = vadd.f32 %v162, %v589
    %v594 = vld [vmem:[%s3] sm:$0x1]
    %v596 = vlaneseq
    %v597 = vshrl.u32 %v596, 7
    %v598 = vsub.s32 0, %v597
    %v599 = vrot.slane %v594, %v598
    %v601 = vmul.f32 %v590, %v599
    %v602 = vmul.f32 %v591, %v599
    %v603 = vmul.f32 %v592, %v599
    %v604 = vmul.f32 %v593, %v599
    %605 = vst [vmem:[#allocation2] sm:$0xff] %v601
    %606 = vst [vmem:[#allocation2 + $0x8] sm:$0xff] %v602
    %607 = vst [vmem:[#allocation2 + $0x10] sm:$0xff] %v603
    %608 = vst [vmem:[#allocation2 + $0x18] sm:$0xff] %v604
    // Predicated region
    $region22: #{tpu_custom_call.1} parent=1 // pred_check
      _
    $region23: #{tpu_custom_call.1} parent=1 // pred_check_branch
      %610 = sbr.rel (0) target = $region25
    $region24: #{tpu_custom_call.1} parent=1 // pred_region
      %s612 = ssub.s32 512, 512
      %613 = vsyncadd [#allocation3], %s612
      %s614 = sshll.u32 [#allocation2], 4
      %s615 = int_to_ptr.vmem [resolvable:$true] %s614
      %620 = dma.vmem_to_hbm [thread:$0]  %s615, 512, %s5, [#allocation3], 128, 128, 8
    $region25: #{tpu_custom_call.1} parent=1 // pred_fallthru
      _
    // Predicated region
    $region26: #{tpu_custom_call.1} parent=1 // pred_check
      _
    $region27: #{tpu_custom_call.1} parent=1 // pred_check_branch
      %622 = sbr.rel (0) target = $region29
    $region28: #{tpu_custom_call.1} parent=1 // pred_region
      %623 = dma.done [#allocation3], 512
    $region29: #{tpu_custom_call.1} parent=1 // pred_fallthru
      _
    %624 = vsyncpa [#allocation3], 1

</llo_original>
